<compile_context>
chip_gen: v7x
topology: tpu7x:2x2x1
jax: 0.10.0
libtpu: 0.0.40
codegen_flags: <defaults>
</compile_context>

<pallas_src>
import jax
import jax.numpy as jnp
from jax.experimental import pallas as pl
from jax.experimental.pallas import tpu as pltpu

LANE = 128         # lane width / MXU alignment target
SUBLANE = 8        # f32 sublane granularity
_NEG_SLOPE = 0.01  # torch.nn.LeakyReLU default negative_slope


def _round_up(x, m):
    return ((x + m - 1) // m) * m


def _leaky_relu(x):
    # max(x, 0.01*x) == LeakyReLU(x) for 0 <= slope <= 1; 2 VPU ops vs 3.
    return jnp.maximum(x, _NEG_SLOPE * x)


def _act_dtype():
    """bf16 bias+activation on bf16-capable VALUs (v6e/v7x), f32 elsewhere."""
    try:
        kind = jax.devices()[0].device_kind.lower()
    except Exception:
        kind = ""
    return jnp.bfloat16 if ("v6" in kind or "v7" in kind) else jnp.float32


def _vmem_budget_and_limit():
    """Generation-aware (budget, compiler vmem_limit) in bytes."""
    try:
        cap = int(pltpu.get_tpu_info().vmem_capacity_bytes)
    except Exception:
        cap = 64 * 1024 * 1024        # conservative default (v7x per-core VMEM)
    limit = min(cap - 16 * 1024 * 1024, int(cap * 0.85))   # 48 MiB on v7x, ~109 MiB on v5e/v6e
    limit = max(limit, 32 * 1024 * 1024)
    budget = limit - 8 * 1024 * 1024                        # reconcile heuristic vs limit
    return budget, limit


# --------------------------------------------------------------------------
# Fused path: all 4 layers in one kernel, weights resident in VMEM.
# --------------------------------------------------------------------------

def _make_mlp_kernel(act_dtype):
    def kernel(x_ref,
               w1_ref, b1_ref,
               w2_ref, b2_ref,
               w3_ref, b3_ref,
               w4_ref, b4_ref,
               o_ref):
        def layer(h, w_ref, b_ref):
            acc = jnp.dot(h.astype(jnp.bfloat16), w_ref[...],
                          preferred_element_type=jnp.float32)
            acc = acc.astype(act_dtype) + b_ref[...].astype(act_dtype)
            return _leaky_relu(acc)

        h = layer(x_ref[...], w1_ref, b1_ref)
        h = layer(h, w2_ref, b2_ref)
        h = layer(h, w3_ref, b3_ref)
        out = jnp.dot(h.astype(jnp.bfloat16), w4_ref[...],
                      preferred_element_type=jnp.float32) + b4_ref[...]
        o_ref[...] = out.astype(o_ref.dtype)
    return kernel


def _vmem_estimate(bb, in_dim, nf_p, out_dim, weight_bytes, x_bytes, out_bytes):
    stream = 2 * bb * in_dim * x_bytes + 2 * bb * out_dim * out_bytes  # double-buffered x/out tiles
    live = 3 * bb * nf_p * 4       # live f32 accumulator + bf16 MXU inputs + compiler headroom
    return weight_bytes + stream + live + (2 << 20)  # + MXU staging / spill slack


def _pick_block_batch(B, in_dim, nf_p, out_dim, weight_bytes, x_bytes, out_bytes,
                      budget, block_batch=None):
    B8 = _round_up(max(B, 1), SUBLANE)
    bb = 2048 if block_batch is None else block_batch
    bb = min(bb, B8)
    # Keep at least 2 grid steps when the batch allows it so the "parallel"
    # axis can be split across v7x's two TensorCores (harmless on 1-TC chips:
    # per-step overhead is only ~0.35 us).
    if B8 >= 2 * SUBLANE:
        bb = min(bb, _round_up((B8 + 1) // 2, SUBLANE))
    bb = max(SUBLANE, _round_up(bb, SUBLANE))
    while bb > SUBLANE and _vmem_estimate(bb, in_dim, nf_p, out_dim,
                                          weight_bytes, x_bytes, out_bytes) > budget:
        bb = max(SUBLANE, _round_up(bb // 2, SUBLANE))
    return bb


# --------------------------------------------------------------------------
# Weight-tiled fallback: per-layer tiled matmul when weights don't fit VMEM.
# --------------------------------------------------------------------------

def _make_linear_kernel(apply_act):
    def kernel(x_ref, w_ref, b_ref, o_ref, acc_ref):
        @pl.when(pl.program_id(2) == 0)
        def _():
            acc_ref[...] = jnp.zeros_like(acc_ref)

        acc_ref[...] += jnp.dot(x_ref[...].astype(jnp.bfloat16), w_ref[...],
                                preferred_element_type=jnp.float32)

        @pl.when(pl.program_id(2) == pl.num_programs(2) - 1)
        def _():
            h = acc_ref[...] + b_ref[...].astype(jnp.float32)
            if apply_act:
                h = _leaky_relu(h)
            o_ref[...] = h.astype(o_ref.dtype)
    return kernel


def _tiled_linear(x, w, b, *, apply_act, out_dtype, vmem_limit,
                  tm=512, tn=512, tk=512):
    M, K = x.shape
    Kw, N = w.shape
    assert K == Kw, (K, Kw)

    tm = max(SUBLANE, min(_round_up(tm, SUBLANE), _round_up(M, SUBLANE)))
    tn = min(tn, N) if N % LANE == 0 else N          # full (unaligned) N is legal
    tk = next((c for c in (tk, 512, 256, 128) if K % c == 0), K)  # tk must divide K

    grid = (pl.cdiv(M, tm), pl.cdiv(N, tn), K // tk)

    return pl.pallas_call(
        _make_linear_kernel(apply_act),
        out_shape=jax.ShapeDtypeStruct((M, N), out_dtype),
        grid_spec=pltpu.PrefetchScalarGridSpec(
            num_scalar_prefetch=0,
            grid=grid,
            in_specs=[
                pl.BlockSpec((tm, tk), lambda i, j, k: (i, k)),
                pl.BlockSpec((tk, tn), lambda i, j, k: (k, j)),
                pl.BlockSpec((1, tn), lambda i, j, k: (0, j)),
            ],
            out_specs=pl.BlockSpec((tm, tn), lambda i, j, k: (i, j)),
            scratch_shapes=[pltpu.VMEM((tm, tn), jnp.float32)],
        ),
        compiler_params=pltpu.CompilerParams(
            dimension_semantics=("parallel", "parallel", "arbitrary"),
            vmem_limit_bytes=vmem_limit,
        ),
    )(x, w, b)


def _layered_forward(x, packed, out_dtype, vmem_limit):
    """Fallback for large nf: stream weights layer by layer, bf16 intermediates."""
    h = _tiled_linear(x, packed["w1"], packed["b1"], apply_act=True,
                      out_dtype=jnp.bfloat16, vmem_limit=vmem_limit)
    h = _tiled_linear(h, packed["w2"], packed["b2"], apply_act=True,
                      out_dtype=jnp.bfloat16, vmem_limit=vmem_limit)
    h = _tiled_linear(h, packed["w3"], packed["b3"], apply_act=True,
                      out_dtype=jnp.bfloat16, vmem_limit=vmem_limit)
    return _tiled_linear(h, packed["w4"], packed["b4"], apply_act=False,
                         out_dtype=out_dtype, vmem_limit=vmem_limit)


# --------------------------------------------------------------------------
# Params
# --------------------------------------------------------------------------

def init_prediction_network_params(key, in_dim, nf, out_dim):
    """Xavier-uniform weights (stored (in, out) so the kernel does x @ W), zero biases."""
    def xavier_uniform(k, fan_in, fan_out):
        bound = jnp.sqrt(6.0 / (fan_in + fan_out))
        return jax.random.uniform(k, (fan_in, fan_out), jnp.float32,
                                  minval=-bound, maxval=bound)

    k1, k2, k3, k4 = jax.random.split(key, 4)
    return {
        "w1": xavier_uniform(k1, in_dim, nf),  "b1": jnp.zeros((1, nf), jnp.float32),
        "w2": xavier_uniform(k2, nf, nf),      "b2": jnp.zeros((1, nf), jnp.float32),
        "w3": xavier_uniform(k3, nf, nf),      "b3": jnp.zeros((1, nf), jnp.float32),
        "w4": xavier_uniform(k4, nf, out_dim), "b4": jnp.zeros((1, out_dim), jnp.float32),
    }


def pack_params(params, compute_dtype=jnp.bfloat16):
    """Zero-pad only the hidden dim nf to a multiple of 128; cast weights to bf16.

    in_dim (w1 rows) and out_dim (w4 cols) keep their true sizes so x needs no
    wrapper-side pad and the output needs no post-kernel column slice. Hidden
    zero-padding is exact: padded hidden units get zero weight/bias and
    LeakyReLU(0)=0, so they never contribute.
    """
    in_dim, nf = params["w1"].shape
    out_dim = params["w4"].shape[1]
    nf_p = _round_up(nf, LANE)

    def pad2(a, rows, cols):
        return jnp.pad(a, ((0, rows - a.shape[0]), (0, cols - a.shape[1])))

    return {
        "w1": pad2(params["w1"], in_dim, nf_p).astype(compute_dtype),
        "b1": pad2(params["b1"], 1, nf_p).astype(jnp.float32),
        "w2": pad2(params["w2"], nf_p, nf_p).astype(compute_dtype),
        "b2": pad2(params["b2"], 1, nf_p).astype(jnp.float32),
        "w3": pad2(params["w3"], nf_p, nf_p).astype(compute_dtype),
        "b3": pad2(params["b3"], 1, nf_p).astype(jnp.float32),
        "w4": pad2(params["w4"], nf_p, out_dim).astype(compute_dtype),
        "b4": params["b4"].astype(jnp.float32),
    }


# --------------------------------------------------------------------------
# Forward
# --------------------------------------------------------------------------

def prediction_network_forward(x, packed, *, out_dtype=None, block_batch=None):
    """x: [B, in_dim] (f32 or bf16, no wrapper cast); returns [B, out_dim]."""
    B, in_dim = x.shape
    assert in_dim == packed["w1"].shape[0], "x feature dim mismatch"
    nf_p = packed["w1"].shape[1]
    out_dim = packed["w4"].shape[1]
    out_dtype = x.dtype if out_dtype is None else out_dtype

    budget, limit = _vmem_budget_and_limit()
    weight_bytes = sum(int(v.size) * v.dtype.itemsize for v in packed.values())
    x_bytes = x.dtype.itemsize
    out_bytes = jnp.dtype(out_dtype).itemsize

    # Weight-tiled fallback when even the smallest batch tile can't keep the
    # whole weight set resident in VMEM (large nf; hits v7x's 64 MiB first).
    if _vmem_estimate(SUBLANE, in_dim, nf_p, out_dim,
                      weight_bytes, x_bytes, out_bytes) > budget:
        return _layered_forward(x, packed, out_dtype, limit)

    bb = _pick_block_batch(B, in_dim, nf_p, out_dim, weight_bytes,
                           x_bytes, out_bytes, budget, block_batch)
    grid = (pl.cdiv(B, bb),)   # partial last block handled by Pallas (masked writeback)

    def resident(a):
        # Grid-invariant parameter: single VMEM copy, no double buffering.
        return pl.BlockSpec(a.shape, lambda i: (0, 0), pipeline_mode=pl.Buffered(1))

    in_specs = [
        pl.BlockSpec((bb, in_dim), lambda i: (i, 0)),   # x tile: default double-buffered stream
        resident(packed["w1"]), resident(packed["b1"]),
        resident(packed["w2"]), resident(packed["b2"]),
        resident(packed["w3"]), resident(packed["b3"]),
        resident(packed["w4"]), resident(packed["b4"]),
    ]
    out_spec = pl.BlockSpec((bb, out_dim), lambda i: (i, 0))

    return pl.pallas_call(
        _make_mlp_kernel(_act_dtype()),
        out_shape=jax.ShapeDtypeStruct((B, out_dim), out_dtype),
        grid_spec=pltpu.PrefetchScalarGridSpec(
            num_scalar_prefetch=0,
            grid=grid,
            in_specs=in_specs,
            out_specs=out_spec,
        ),
        compiler_params=pltpu.CompilerParams(
            dimension_semantics=("parallel",),          # megacore / v7x dual-TC split
            vmem_limit_bytes=limit,
        ),
    )(x,
      packed["w1"], packed["b1"],
      packed["w2"], packed["b2"],
      packed["w3"], packed["b3"],
      packed["w4"], packed["b4"])


# --------------------------------------------------------------------------
# References for the self-test
# --------------------------------------------------------------------------

def _reference_forward(x, packed, act_dtype):
    """Pure-JAX reference with identical dtype handling as the fused kernel."""
    def layer(h, w, b):
        acc = jnp.dot(h.astype(jnp.bfloat16), w, preferred_element_type=jnp.float32)
        acc = acc.astype(act_dtype) + b.astype(act_dtype)
        return _leaky_relu(acc)

    h = layer(x, packed["w1"], packed["b1"])
    h = layer(h, packed["w2"], packed["b2"])
    h = layer(h, packed["w3"], packed["b3"])
    out = jnp.dot(h.astype(jnp.bfloat16), packed["w4"],
                  preferred_element_type=jnp.float32) + packed["b4"]
    return out.astype(x.dtype)


def _reference_forward_f32(x, params):
    """Full-f32 reference matching the PyTorch module's math."""
    def layer(h, w, b, act):
        h = jnp.dot(h, w, precision=jax.lax.Precision.HIGHEST) + b
        return _leaky_relu(h) if act else h

    h = layer(x, params["w1"], params["b1"], True)
    h = layer(h, params["w2"], params["b2"], True)
    h = layer(h, params["w3"], params["b3"], True)
    return layer(h, params["w4"], params["b4"], False)


if __name__ == "__main__":
    key = jax.random.PRNGKey(0)
    k_param, k_x = jax.random.split(key)

    # Small test shapes consistent with the module. (At this size the kernel is
    # launch-overhead-dominated; the wrapper is tuned for large B / nf.)
    batch, in_dim, nf, out_dim = 8, 32, 64, 16

    params = init_prediction_network_params(k_param, in_dim, nf, out_dim)
    packed = pack_params(params)
    x = jax.random.normal(k_x, (batch, in_dim), jnp.float32)

    # Fused-weights-resident path.
    out = jax.block_until_ready(prediction_network_forward(x, packed))
    assert out.shape == (batch, out_dim)
    assert out.dtype == x.dtype

    ref_match = _reference_forward(x, packed, _act_dtype())
    ref_f32 = _reference_forward_f32(x, params)
    assert jnp.allclose(out, ref_match, atol=2e-2, rtol=2e-2), "fused kernel vs matched-dtype ref"
    assert jnp.allclose(out, ref_f32, atol=1e-1, rtol=1e-1), "fused kernel vs f32 ref (bf16 parity)"

    # Exercise the weight-tiled fallback path explicitly (forced) as well.
    _, limit = _vmem_budget_and_limit()
    out_fb = jax.block_until_ready(_layered_forward(x, packed, jnp.float32, limit))
    assert out_fb.shape == (batch, out_dim)
    assert jnp.allclose(out_fb, ref_f32, atol=1e-1, rtol=1e-1), "fallback vs f32 ref"

    print("KERNEL_OK")
</pallas_src>

<mosaic_0001>
module attributes {stable_mosaic.version = 11 : i64} {
  func.func @kernel(%arg0: i32, %arg1: memref<8x32xf32, #tpu.memory_space<vmem>>, %arg2: memref<32x128xbf16, #tpu.memory_space<vmem>>, %arg3: memref<1x128xf32, #tpu.memory_space<vmem>>, %arg4: memref<128x128xbf16, #tpu.memory_space<vmem>>, %arg5: memref<1x128xf32, #tpu.memory_space<vmem>>, %arg6: memref<128x128xbf16, #tpu.memory_space<vmem>>, %arg7: memref<1x128xf32, #tpu.memory_space<vmem>>, %arg8: memref<128x16xbf16, #tpu.memory_space<vmem>>, %arg9: memref<1x16xf32, #tpu.memory_space<vmem>>, %arg10: memref<8x16xf32, #tpu.memory_space<vmem>>) attributes {dimension_semantics = [#tpu.dimension_semantics<parallel>], iteration_bounds = array<i64: 1>, scalar_prefetch = 0 : i64, scratch_operands = 0 : i64, tpu.core_type = #tpu.core_type<tc>, window_params = [{transform_indices = @transform_0, window_bounds = array<i64: 8, 32>}, {pipeline_mode = #tpu.pipeline_mode<synchronous>, transform_indices = @transform_1, window_bounds = array<i64: 32, 128>}, {pipeline_mode = #tpu.pipeline_mode<synchronous>, transform_indices = @transform_2, window_bounds = array<i64: 1, 128>}, {pipeline_mode = #tpu.pipeline_mode<synchronous>, transform_indices = @transform_3, window_bounds = array<i64: 128, 128>}, {pipeline_mode = #tpu.pipeline_mode<synchronous>, transform_indices = @transform_4, window_bounds = array<i64: 1, 128>}, {pipeline_mode = #tpu.pipeline_mode<synchronous>, transform_indices = @transform_5, window_bounds = array<i64: 128, 128>}, {pipeline_mode = #tpu.pipeline_mode<synchronous>, transform_indices = @transform_6, window_bounds = array<i64: 1, 128>}, {pipeline_mode = #tpu.pipeline_mode<synchronous>, transform_indices = @transform_7, window_bounds = array<i64: 128, 16>}, {pipeline_mode = #tpu.pipeline_mode<synchronous>, transform_indices = @transform_8, window_bounds = array<i64: 1, 16>}, {transform_indices = @transform_9, window_bounds = array<i64: 8, 16>}]} {
    %c0 = arith.constant 0 : index
    %c0_0 = arith.constant 0 : index
    %0 = vector.load %arg1[%c0, %c0_0] : memref<8x32xf32, #tpu.memory_space<vmem>>, vector<8x32xf32>
    %1 = arith.truncf %0 : vector<8x32xf32> to vector<8x32xbf16>
    %c0_1 = arith.constant 0 : index
    %c0_2 = arith.constant 0 : index
    %2 = vector.load %arg2[%c0_1, %c0_2] : memref<32x128xbf16, #tpu.memory_space<vmem>>, vector<32x128xbf16>
    %cst = arith.constant dense<0.000000e+00> : vector<8x128xf32>
    %3 = tpu.matmul %1, %2, %cst {dimension_numbers = #tpu.dot_dimension_numbers<[1], [0], [0], [1], [0, 0, 1, 1], [], []>} : vector<8x32xbf16>, vector<32x128xbf16>, vector<8x128xf32> -> vector<8x128xf32>
    %c0_3 = arith.constant 0 : index
    %c0_4 = arith.constant 0 : index
    %4 = vector.load %arg3[%c0_3, %c0_4] : memref<1x128xf32, #tpu.memory_space<vmem>>, vector<1x128xf32>
    %5 = vector.broadcast %4 : vector<1x128xf32> to vector<8x128xf32>
    %6 = arith.addf %3, %5 : vector<8x128xf32>
    %cst_5 = arith.constant 0.00999999977 : f32
    %7 = vector.broadcast %cst_5 : f32 to vector<8x128xf32>
    %8 = arith.mulf %7, %6 : vector<8x128xf32>
    %9 = arith.maximumf %6, %8 : vector<8x128xf32>
    %10 = arith.truncf %9 : vector<8x128xf32> to vector<8x128xbf16>
    %c0_6 = arith.constant 0 : index
    %c0_7 = arith.constant 0 : index
    %11 = vector.load %arg4[%c0_6, %c0_7] : memref<128x128xbf16, #tpu.memory_space<vmem>>, vector<128x128xbf16>
    %cst_8 = arith.constant dense<0.000000e+00> : vector<8x128xf32>
    %12 = tpu.matmul %10, %11, %cst_8 {dimension_numbers = #tpu.dot_dimension_numbers<[1], [0], [0], [1], [0, 0, 1, 1], [], []>} : vector<8x128xbf16>, vector<128x128xbf16>, vector<8x128xf32> -> vector<8x128xf32>
    %c0_9 = arith.constant 0 : index
    %c0_10 = arith.constant 0 : index
    %13 = vector.load %arg5[%c0_9, %c0_10] : memref<1x128xf32, #tpu.memory_space<vmem>>, vector<1x128xf32>
    %14 = vector.broadcast %13 : vector<1x128xf32> to vector<8x128xf32>
    %15 = arith.addf %12, %14 : vector<8x128xf32>
    %cst_11 = arith.constant 0.00999999977 : f32
    %16 = vector.broadcast %cst_11 : f32 to vector<8x128xf32>
    %17 = arith.mulf %16, %15 : vector<8x128xf32>
    %18 = arith.maximumf %15, %17 : vector<8x128xf32>
    %19 = arith.truncf %18 : vector<8x128xf32> to vector<8x128xbf16>
    %c0_12 = arith.constant 0 : index
    %c0_13 = arith.constant 0 : index
    %20 = vector.load %arg6[%c0_12, %c0_13] : memref<128x128xbf16, #tpu.memory_space<vmem>>, vector<128x128xbf16>
    %cst_14 = arith.constant dense<0.000000e+00> : vector<8x128xf32>
    %21 = tpu.matmul %19, %20, %cst_14 {dimension_numbers = #tpu.dot_dimension_numbers<[1], [0], [0], [1], [0, 0, 1, 1], [], []>} : vector<8x128xbf16>, vector<128x128xbf16>, vector<8x128xf32> -> vector<8x128xf32>
    %c0_15 = arith.constant 0 : index
    %c0_16 = arith.constant 0 : index
    %22 = vector.load %arg7[%c0_15, %c0_16] : memref<1x128xf32, #tpu.memory_space<vmem>>, vector<1x128xf32>
    %23 = vector.broadcast %22 : vector<1x128xf32> to vector<8x128xf32>
    %24 = arith.addf %21, %23 : vector<8x128xf32>
    %cst_17 = arith.constant 0.00999999977 : f32
    %25 = vector.broadcast %cst_17 : f32 to vector<8x128xf32>
    %26 = arith.mulf %25, %24 : vector<8x128xf32>
    %27 = arith.maximumf %24, %26 : vector<8x128xf32>
    %28 = arith.truncf %27 : vector<8x128xf32> to vector<8x128xbf16>
    %c0_18 = arith.constant 0 : index
    %c0_19 = arith.constant 0 : index
    %29 = vector.load %arg8[%c0_18, %c0_19] : memref<128x16xbf16, #tpu.memory_space<vmem>>, vector<128x16xbf16>
    %cst_20 = arith.constant dense<0.000000e+00> : vector<8x16xf32>
    %30 = tpu.matmul %28, %29, %cst_20 {dimension_numbers = #tpu.dot_dimension_numbers<[1], [0], [0], [1], [0, 0, 1, 1], [], []>} : vector<8x128xbf16>, vector<128x16xbf16>, vector<8x16xf32> -> vector<8x16xf32>
    %c0_21 = arith.constant 0 : index
    %c0_22 = arith.constant 0 : index
    %31 = vector.load %arg9[%c0_21, %c0_22] : memref<1x16xf32, #tpu.memory_space<vmem>>, vector<1x16xf32>
    %32 = vector.broadcast %31 : vector<1x16xf32> to vector<8x16xf32>
    %33 = arith.addf %30, %32 : vector<8x16xf32>
    %c0_23 = arith.constant 0 : index
    %c0_24 = arith.constant 0 : index
    %34 = vector.load %arg10[%c0_23, %c0_24] : memref<8x16xf32, #tpu.memory_space<vmem>>, vector<8x16xf32>
    tpu.vector_store %arg10[%c0_23, %c0_24], %33 {strides = array<i32>} : memref<8x16xf32, #tpu.memory_space<vmem>>, vector<8x16xf32>,
    return
  }
  func.func @transform_0(%arg0: i32) -> (i32, i32) {
    %c0_i32 = arith.constant 0 : i32
    %c0_i32_0 = arith.constant 0 : i32
    return %arg0, %c0_i32 : i32, i32
  }
  func.func @transform_1(%arg0: i32) -> (i32, i32) {
    %c0_i32 = arith.constant 0 : i32
    %c0_i32_0 = arith.constant 0 : i32
    %c0_i32_1 = arith.constant 0 : i32
    return %c0_i32, %c0_i32_0 : i32, i32
  }
  func.func @transform_2(%arg0: i32) -> (i32, i32) {
    %c0_i32 = arith.constant 0 : i32
    %c0_i32_0 = arith.constant 0 : i32
    %c0_i32_1 = arith.constant 0 : i32
    return %c0_i32, %c0_i32_0 : i32, i32
  }
  func.func @transform_3(%arg0: i32) -> (i32, i32) {
    %c0_i32 = arith.constant 0 : i32
    %c0_i32_0 = arith.constant 0 : i32
    %c0_i32_1 = arith.constant 0 : i32
    return %c0_i32, %c0_i32_0 : i32, i32
  }
  func.func @transform_4(%arg0: i32) -> (i32, i32) {
    %c0_i32 = arith.constant 0 : i32
    %c0_i32_0 = arith.constant 0 : i32
    %c0_i32_1 = arith.constant 0 : i32
    return %c0_i32, %c0_i32_0 : i32, i32
  }
  func.func @transform_5(%arg0: i32) -> (i32, i32) {
    %c0_i32 = arith.constant 0 : i32
    %c0_i32_0 = arith.constant 0 : i32
    %c0_i32_1 = arith.constant 0 : i32
    return %c0_i32, %c0_i32_0 : i32, i32
  }
  func.func @transform_6(%arg0: i32) -> (i32, i32) {
    %c0_i32 = arith.constant 0 : i32
    %c0_i32_0 = arith.constant 0 : i32
    %c0_i32_1 = arith.constant 0 : i32
    return %c0_i32, %c0_i32_0 : i32, i32
  }
  func.func @transform_7(%arg0: i32) -> (i32, i32) {
    %c0_i32 = arith.constant 0 : i32
    %c0_i32_0 = arith.constant 0 : i32
    %c0_i32_1 = arith.constant 0 : i32
    return %c0_i32, %c0_i32_0 : i32, i32
  }
  func.func @transform_8(%arg0: i32) -> (i32, i32) {
    %c0_i32 = arith.constant 0 : i32
    %c0_i32_0 = arith.constant 0 : i32
    %c0_i32_1 = arith.constant 0 : i32
    return %c0_i32, %c0_i32_0 : i32, i32
  }
  func.func @transform_9(%arg0: i32) -> (i32, i32) {
    %c0_i32 = arith.constant 0 : i32
    %c0_i32_0 = arith.constant 0 : i32
    return %arg0, %c0_i32 : i32, i32
  }
}

</mosaic_0001>

<llo_original>
// kernel: tpu_custom_call.1
$region0: #{tpu_custom_call.1}
  #allocation0 [shape = 'u32[]', space=smem, size = 0x4, offset = 0x4, fixed_abs, tag = 'smem constant byte address 0x4 - core index']
  #allocation1 [shape = 'u32[144,128]{1,0:T(1,128)}', space=vmem, size = 0x12000, scoped, tag = 'internal scratch']
  %s0 = inlined_call_operand.hbm [shape: f32[8,32], index: 0, kind: input, shape index: {}]
  %s1 = inlined_call_operand.vmem [shape: bf16[32,128], index: 1, kind: input, shape index: {}]
  %s2 = inlined_call_operand.vmem [shape: f32[1,128], index: 2, kind: input, shape index: {}]
  %s3 = inlined_call_operand.vmem [shape: bf16[128,128], index: 3, kind: input, shape index: {}]
  %s4 = inlined_call_operand.vmem [shape: f32[1,128], index: 4, kind: input, shape index: {}]
  %s5 = inlined_call_operand.hbm [shape: bf16[128,128], index: 5, kind: input, shape index: {}]
  %s6 = inlined_call_operand.vmem [shape: f32[1,128], index: 6, kind: input, shape index: {}]
  %s7 = inlined_call_operand.vmem [shape: bf16[128,16], index: 7, kind: input, shape index: {}]
  %s8 = inlined_call_operand.vmem [shape: f32[1,16], index: 8, kind: input, shape index: {}]
  %s9 = inlined_call_operand.hbm [shape: f32[8,16], index: 9, kind: output, shape index: {}]
  %s10 = sld [smem:[#allocation0]]
  $region54: #{tpu_custom_call.1} parent=0
    _
  %s12 = ssub.s32 1, %s10
  %s13 = scalar_select 0, %s12, %s10
  $region1: #{tpu_custom_call.1} parent=0
    #allocation2 [shape = 'u8[4096]{0}', space=vmem, size = 0x1000, scoped, tag = 'input window, operand 0, single buffered']
    #allocation3 [shape = 's32[1]{0}', space=sflag, size = 0x4, scoped, tag = 'scoped memory for tpu_custom_call.1']
    #allocation4 [shape = 's32[1]{0}', space=sflag, size = 0x4, scoped, tag = 'scoped memory for tpu_custom_call.1']
    #allocation5 [shape = 'u8[32768]{0}', space=vmem, size = 0x8000, scoped, tag = 'input window, operand 5, single buffered']
    #allocation6 [shape = 's32[1]{0}', space=sflag, size = 0x4, scoped, tag = 'scoped memory for tpu_custom_call.1']
    #allocation7 [shape = 'u8[4096]{0}', space=vmem, size = 0x1000, scoped, tag = 'output window, operand 0, single buffered']
    %14 = vsyncpa [#allocation3], 0
    %15 = vsyncpa [#allocation6], 0
    %16 = vsyncpa [#allocation4], 0
    // Predicated region
    $region2: #{tpu_custom_call.1} parent=1 // pred_check
      _
    $region3: #{tpu_custom_call.1} parent=1 // pred_check_branch
      %18 = sbr.rel (0) target = $region5
    $region4: #{tpu_custom_call.1} parent=1 // pred_region
      %s20 = ssub.s32 128, 128
      %21 = vsyncadd [#allocation3], %s20
      %s23 = sshll.u32 [#allocation2], 4
      %s24 = int_to_ptr.vmem [resolvable:$true] %s23
      %26 = dma.hbm_to_vmem [thread:$0]  %s0, 128, %s24, [#allocation3]
    $region5: #{tpu_custom_call.1} parent=1 // pred_fallthru
      _
    // Predicated region
    $region6: #{tpu_custom_call.1} parent=1 // pred_check
      _
    $region7: #{tpu_custom_call.1} parent=1 // pred_check_branch
      %28 = sbr.rel (0) target = $region9
    $region8: #{tpu_custom_call.1} parent=1 // pred_region
      _
    $region9: #{tpu_custom_call.1} parent=1 // pred_fallthru
      _
    // Predicated region
    $region10: #{tpu_custom_call.1} parent=1 // pred_check
      _
    $region11: #{tpu_custom_call.1} parent=1 // pred_check_branch
      %30 = sbr.rel (0) target = $region13
    $region12: #{tpu_custom_call.1} parent=1 // pred_region
      _
    $region13: #{tpu_custom_call.1} parent=1 // pred_fallthru
      _
    // Predicated region
    $region14: #{tpu_custom_call.1} parent=1 // pred_check
      _
    $region15: #{tpu_custom_call.1} parent=1 // pred_check_branch
      %32 = sbr.rel (0) target = $region17
    $region16: #{tpu_custom_call.1} parent=1 // pred_region
      _
    $region17: #{tpu_custom_call.1} parent=1 // pred_fallthru
      _
    // Predicated region
    $region18: #{tpu_custom_call.1} parent=1 // pred_check
      _
    $region19: #{tpu_custom_call.1} parent=1 // pred_check_branch
      %34 = sbr.rel (0) target = $region21
    $region20: #{tpu_custom_call.1} parent=1 // pred_region
      _
    $region21: #{tpu_custom_call.1} parent=1 // pred_fallthru
      _
    // Predicated region
    $region22: #{tpu_custom_call.1} parent=1 // pred_check
      _
    $region23: #{tpu_custom_call.1} parent=1 // pred_check_branch
      %36 = sbr.rel (0) target = $region25
    $region24: #{tpu_custom_call.1} parent=1 // pred_region
      %s38 = ssub.s32 1024, 1024
      %39 = vsyncadd [#allocation6], %s38
      %s40 = sshll.u32 [#allocation5], 4
      %s41 = int_to_ptr.vmem [resolvable:$true] %s40
      %46 = dma.hbm_to_vmem [thread:$0]  %s5, 1024, %s41, [#allocation6], 64, 64, 4
    $region25: #{tpu_custom_call.1} parent=1 // pred_fallthru
      _
    // Predicated region
    $region26: #{tpu_custom_call.1} parent=1 // pred_check
      _
    $region27: #{tpu_custom_call.1} parent=1 // pred_check_branch
      %48 = sbr.rel (0) target = $region29
    $region28: #{tpu_custom_call.1} parent=1 // pred_region
      _
    $region29: #{tpu_custom_call.1} parent=1 // pred_fallthru
      _
    // Predicated region
    $region30: #{tpu_custom_call.1} parent=1 // pred_check
      _
    $region31: #{tpu_custom_call.1} parent=1 // pred_check_branch
      %50 = sbr.rel (0) target = $region33
    $region32: #{tpu_custom_call.1} parent=1 // pred_region
      _
    $region33: #{tpu_custom_call.1} parent=1 // pred_fallthru
      _
    // Predicated region
    $region34: #{tpu_custom_call.1} parent=1 // pred_check
      _
    $region35: #{tpu_custom_call.1} parent=1 // pred_check_branch
      %52 = sbr.rel (0) target = $region37
    $region36: #{tpu_custom_call.1} parent=1 // pred_region
      _
    $region37: #{tpu_custom_call.1} parent=1 // pred_fallthru
      _
    // Predicated region
    $region38: #{tpu_custom_call.1} parent=1 // pred_check
      _
    $region39: #{tpu_custom_call.1} parent=1 // pred_check_branch
      %54 = sbr.rel (0) target = $region41
    $region40: #{tpu_custom_call.1} parent=1 // pred_region
      %55 = dma.done [#allocation3], 128
    $region41: #{tpu_custom_call.1} parent=1 // pred_fallthru
      _
    // Predicated region
    $region42: #{tpu_custom_call.1} parent=1 // pred_check
      _
    $region43: #{tpu_custom_call.1} parent=1 // pred_check_branch
      %57 = sbr.rel (0) target = $region45
    $region44: #{tpu_custom_call.1} parent=1 // pred_region
      %58 = dma.done [#allocation6], 1024
    $region45: #{tpu_custom_call.1} parent=1 // pred_fallthru
      _
    %v60 = vld [vmem:[#allocation2] sm:$0xff]
    %v61 = vpack.c.bf16 %v60, %v60
    %v62 = vld [vmem:[%s1] sm:$0xf]
    %v63 = vld [vmem:[%s1 + $0x4] sm:$0xf]
    %v64 = vld [vmem:[%s1 + $0x8] sm:$0xf]
    %v65 = vld [vmem:[%s1 + $0xc] sm:$0xf]
    %v66 = vld [vmem:[%s2] sm:$0x1]
    %v68 = vlaneseq
    %v69 = vshrl.u32 %v68, 7
    %v70 = vsub.s32 0, %v69
    %v71 = vrot.slane %v66, %v70
    %v77 = vunpack.c.l.b16 %v62
    %v78 = vunpack.c.l.b16 %v63
    %v79 = vunpack.c.l.b16 %v64
    %v80 = vunpack.c.l.b16 %v65
    %v81 = vpack.c.b16 %v78, %v77
    %v82 = vpack.c.b16 %v80, %v79
    %vm85 = vcmask 261120
    %v87 = vsel %vm85, %v61, 0
    %89 = vmatprep.subr.bf16.mxu0 0
    %90 = vmatpush1.bf16.msra.mxu0 %v81
    %91 = vmatprep.subr.bf16.mxu0 0
    %92 = vmatpush1.bf16.msra.mxu0 %v82
    %93 = vmatprep.subr.bf16.mxu0 0
    %94 = vmatpush1.bf16.msra.mxu0 0
    %95 = vmatprep.subr.bf16.mxu0 0
    %96 = vmatpush1.bf16.msra.mxu0 0
    %97 = vmatprep.subr.bf16.mxu0 0
    %98 = vmatpush1.bf16.msra.mxu0 0
    %99 = vmatprep.subr.bf16.mxu0 0
    %100 = vmatpush1.bf16.msra.mxu0 0
    %101 = vmatprep.subr.bf16.mxu0 0
    %102 = vmatpush1.bf16.msra.mxu0 0
    %103 = vmatprep.subr.bf16.mxu0 0
    %104 = vmatpush1.bf16.msra.mxu0 0
    %105 = vmatprep.subr.bf16.mxu0 0
    %106 = vmatpush1.bf16.msra.mxu0 0
    %107 = vmatprep.subr.bf16.mxu0 0
    %108 = vmatpush1.bf16.msra.mxu0 0
    %109 = vmatprep.subr.bf16.mxu0 0
    %110 = vmatpush1.bf16.msra.mxu0 0
    %111 = vmatprep.subr.bf16.mxu0 0
    %112 = vmatpush1.bf16.msra.mxu0 0
    %113 = vmatprep.subr.bf16.mxu0 0
    %114 = vmatpush1.bf16.msra.mxu0 0
    %115 = vmatprep.subr.bf16.mxu0 0
    %116 = vmatpush1.bf16.msra.mxu0 0
    %117 = vmatprep.subr.bf16.mxu0 0
    %118 = vmatpush1.bf16.msra.mxu0 0
    %119 = vmatprep.subr.bf16.mxu0 0
    %120 = vmatpush1.bf16.msra.mxu0 0
    %121 = vmatprep.mubr.bf16.mxu0 0
    %122 = vmatmul.mubr.bf16.gmra.mrb[0].mxu0 %v87
    %v123 = vpop.f32.mrb[0].mxu0
    %v124 = vadd.f32 %v71, %v123
    %v125 = vpop.f32.mrb[0].mxu0
    %v126 = vpop.f32.mrb[0].mxu0
    %v127 = vpop.f32.mrb[0].mxu0
    %128 = vdwg.mxu0
    %v129 = vmul.f32 %v124, 0.01
    %v130 = vmax.f32 %v124, %v129
    %v131 = vpack.c.bf16 %v130, %v130
    %v132 = vld [vmem:[%s3] sm:$0xf]
    %v133 = vld [vmem:[%s3 + $0x4] sm:$0xf]
    %v134 = vld [vmem:[%s3 + $0x8] sm:$0xf]
    %v135 = vld [vmem:[%s3 + $0xc] sm:$0xf]
    %v136 = vld [vmem:[%s3 + $0x10] sm:$0xf]
    %v137 = vld [vmem:[%s3 + $0x14] sm:$0xf]
    %v138 = vld [vmem:[%s3 + $0x18] sm:$0xf]
    %v139 = vld [vmem:[%s3 + $0x1c] sm:$0xf]
    %v140 = vld [vmem:[%s3 + $0x20] sm:$0xf]
    %v141 = vld [vmem:[%s3 + $0x24] sm:$0xf]
    %v142 = vld [vmem:[%s3 + $0x28] sm:$0xf]
    %v143 = vld [vmem:[%s3 + $0x2c] sm:$0xf]
    %v144 = vld [vmem:[%s3 + $0x30] sm:$0xf]
    %v145 = vld [vmem:[%s3 + $0x34] sm:$0xf]
    %v146 = vld [vmem:[%s3 + $0x38] sm:$0xf]
    %v147 = vld [vmem:[%s3 + $0x3c] sm:$0xf]
    %v148 = vld [vmem:[%s4] sm:$0x1]
    %v150 = vlaneseq
    %v151 = vshrl.u32 %v150, 7
    %v152 = vsub.s32 0, %v151
    %v153 = vrot.slane %v148, %v152
    %v171 = vunpack.c.l.b16 %v132
    %v172 = vunpack.c.l.b16 %v133
    %v173 = vunpack.c.l.b16 %v134
    %v174 = vunpack.c.l.b16 %v135
    %v175 = vunpack.c.l.b16 %v136
    %v176 = vunpack.c.l.b16 %v137
    %v177 = vunpack.c.l.b16 %v138
    %v178 = vunpack.c.l.b16 %v139
    %v179 = vunpack.c.l.b16 %v140
    %v180 = vunpack.c.l.b16 %v141
    %v181 = vunpack.c.l.b16 %v142
    %v182 = vunpack.c.l.b16 %v143
    %v183 = vunpack.c.l.b16 %v144
    %v184 = vunpack.c.l.b16 %v145
    %v185 = vunpack.c.l.b16 %v146
    %v186 = vunpack.c.l.b16 %v147
    %v187 = vpack.c.b16 %v172, %v171
    %v188 = vpack.c.b16 %v174, %v173
    %v189 = vpack.c.b16 %v176, %v175
    %v190 = vpack.c.b16 %v178, %v177
    %v191 = vpack.c.b16 %v180, %v179
    %v192 = vpack.c.b16 %v182, %v181
    %v193 = vpack.c.b16 %v184, %v183
    %v194 = vpack.c.b16 %v186, %v185
    %203 = vmatprep.subr.bf16.mxu0 0
    %204 = vmatpush1.bf16.msra.mxu0 %v187
    %205 = vmatprep.subr.bf16.mxu0 0
    %206 = vmatpush1.bf16.msra.mxu0 %v188
    %207 = vmatprep.subr.bf16.mxu0 0
    %208 = vmatpush1.bf16.msra.mxu0 %v189
    %209 = vmatprep.subr.bf16.mxu0 0
    %210 = vmatpush1.bf16.msra.mxu0 %v190
    %211 = vmatprep.subr.bf16.mxu0 0
    %212 = vmatpush1.bf16.msra.mxu0 %v191
    %213 = vmatprep.subr.bf16.mxu0 0
    %214 = vmatpush1.bf16.msra.mxu0 %v192
    %215 = vmatprep.subr.bf16.mxu0 0
    %216 = vmatpush1.bf16.msra.mxu0 %v193
    %217 = vmatprep.subr.bf16.mxu0 0
    %218 = vmatpush1.bf16.msra.mxu0 %v194
    %219 = vmatprep.subr.bf16.mxu0 0
    %220 = vmatpush1.bf16.msra.mxu0 0
    %221 = vmatprep.subr.bf16.mxu0 0
    %222 = vmatpush1.bf16.msra.mxu0 0
    %223 = vmatprep.subr.bf16.mxu0 0
    %224 = vmatpush1.bf16.msra.mxu0 0
    %225 = vmatprep.subr.bf16.mxu0 0
    %226 = vmatpush1.bf16.msra.mxu0 0
    %227 = vmatprep.subr.bf16.mxu0 0
    %228 = vmatpush1.bf16.msra.mxu0 0
    %229 = vmatprep.subr.bf16.mxu0 0
    %230 = vmatpush1.bf16.msra.mxu0 0
    %231 = vmatprep.subr.bf16.mxu0 0
    %232 = vmatpush1.bf16.msra.mxu0 0
    %233 = vmatprep.subr.bf16.mxu0 0
    %234 = vmatpush1.bf16.msra.mxu0 0
    %235 = vmatprep.mubr.bf16.mxu0 0
    %236 = vmatmul.mubr.bf16.gmra.mrb[0].mxu0 %v131
    %v237 = vpop.f32.mrb[0].mxu0
    %v238 = vadd.f32 %v153, %v237
    %v239 = vpop.f32.mrb[0].mxu0
    %v240 = vpop.f32.mrb[0].mxu0
    %v241 = vpop.f32.mrb[0].mxu0
    %242 = vdwg.mxu0
    %v243 = vmul.f32 %v238, 0.01
    %v244 = vmax.f32 %v238, %v243
    %v245 = vpack.c.bf16 %v244, %v244
    %v246 = vld [vmem:[#allocation5] sm:$0xf]
    %v247 = vld [vmem:[#allocation5 + $0x4] sm:$0xf]
    %v248 = vld [vmem:[#allocation5 + $0x8] sm:$0xf]
    %v249 = vld [vmem:[#allocation5 + $0xc] sm:$0xf]
    %v250 = vld [vmem:[#allocation5 + $0x10] sm:$0xf]
    %v251 = vld [vmem:[#allocation5 + $0x14] sm:$0xf]
    %v252 = vld [vmem:[#allocation5 + $0x18] sm:$0xf]
    %v253 = vld [vmem:[#allocation5 + $0x1c] sm:$0xf]
    %v254 = vld [vmem:[#allocation5 + $0x20] sm:$0xf]
    %v255 = vld [vmem:[#allocation5 + $0x24] sm:$0xf]
    %v256 = vld [vmem:[#allocation5 + $0x28] sm:$0xf]
    %v257 = vld [vmem:[#allocation5 + $0x2c] sm:$0xf]
    %v258 = vld [vmem:[#allocation5 + $0x30] sm:$0xf]
    %v259 = vld [vmem:[#allocation5 + $0x34] sm:$0xf]
    %v260 = vld [vmem:[#allocation5 + $0x38] sm:$0xf]
    %v261 = vld [vmem:[#allocation5 + $0x3c] sm:$0xf]
    %v262 = vld [vmem:[%s6] sm:$0x1]
    %v264 = vlaneseq
    %v265 = vshrl.u32 %v264, 7
    %v266 = vsub.s32 0, %v265
    %v267 = vrot.slane %v262, %v266
    %v285 = vunpack.c.l.b16 %v246
    %v286 = vunpack.c.l.b16 %v247
    %v287 = vunpack.c.l.b16 %v248
    %v288 = vunpack.c.l.b16 %v249
    %v289 = vunpack.c.l.b16 %v250
    %v290 = vunpack.c.l.b16 %v251
    %v291 = vunpack.c.l.b16 %v252
    %v292 = vunpack.c.l.b16 %v253
    %v293 = vunpack.c.l.b16 %v254
    %v294 = vunpack.c.l.b16 %v255
    %v295 = vunpack.c.l.b16 %v256
    %v296 = vunpack.c.l.b16 %v257
    %v297 = vunpack.c.l.b16 %v258
    %v298 = vunpack.c.l.b16 %v259
    %v299 = vunpack.c.l.b16 %v260
    %v300 = vunpack.c.l.b16 %v261
    %v301 = vpack.c.b16 %v286, %v285
    %v302 = vpack.c.b16 %v288, %v287
    %v303 = vpack.c.b16 %v290, %v289
    %v304 = vpack.c.b16 %v292, %v291
    %v305 = vpack.c.b16 %v294, %v293
    %v306 = vpack.c.b16 %v296, %v295
    %v307 = vpack.c.b16 %v298, %v297
    %v308 = vpack.c.b16 %v300, %v299
    %317 = vmatprep.subr.bf16.mxu0 0
    %318 = vmatpush1.bf16.msra.mxu0 %v301
    %319 = vmatprep.subr.bf16.mxu0 0
    %320 = vmatpush1.bf16.msra.mxu0 %v302
    %321 = vmatprep.subr.bf16.mxu0 0
    %322 = vmatpush1.bf16.msra.mxu0 %v303
    %323 = vmatprep.subr.bf16.mxu0 0
    %324 = vmatpush1.bf16.msra.mxu0 %v304
    %325 = vmatprep.subr.bf16.mxu0 0
    %326 = vmatpush1.bf16.msra.mxu0 %v305
    %327 = vmatprep.subr.bf16.mxu0 0
    %328 = vmatpush1.bf16.msra.mxu0 %v306
    %329 = vmatprep.subr.bf16.mxu0 0
    %330 = vmatpush1.bf16.msra.mxu0 %v307
    %331 = vmatprep.subr.bf16.mxu0 0
    %332 = vmatpush1.bf16.msra.mxu0 %v308
    %333 = vmatprep.subr.bf16.mxu0 0
    %334 = vmatpush1.bf16.msra.mxu0 0
    %335 = vmatprep.subr.bf16.mxu0 0
    %336 = vmatpush1.bf16.msra.mxu0 0
    %337 = vmatprep.subr.bf16.mxu0 0
    %338 = vmatpush1.bf16.msra.mxu0 0
    %339 = vmatprep.subr.bf16.mxu0 0
    %340 = vmatpush1.bf16.msra.mxu0 0
    %341 = vmatprep.subr.bf16.mxu0 0
    %342 = vmatpush1.bf16.msra.mxu0 0
    %343 = vmatprep.subr.bf16.mxu0 0
    %344 = vmatpush1.bf16.msra.mxu0 0
    %345 = vmatprep.subr.bf16.mxu0 0
    %346 = vmatpush1.bf16.msra.mxu0 0
    %347 = vmatprep.subr.bf16.mxu0 0
    %348 = vmatpush1.bf16.msra.mxu0 0
    %349 = vmatprep.mubr.bf16.mxu0 0
    %350 = vmatmul.mubr.bf16.gmra.mrb[0].mxu0 %v245
    %v351 = vpop.f32.mrb[0].mxu0
    %v352 = vadd.f32 %v267, %v351
    %v353 = vpop.f32.mrb[0].mxu0
    %v354 = vpop.f32.mrb[0].mxu0
    %v355 = vpop.f32.mrb[0].mxu0
    %356 = vdwg.mxu0
    %v357 = vmul.f32 %v352, 0.01
    %v358 = vmax.f32 %v352, %v357
    %v359 = vpack.c.bf16 %v358, %v358
    %v360 = vld [vmem:[%s7] sm:$0xf]
    %v361 = vld [vmem:[%s7 + $0x4] sm:$0xf]
    %v362 = vld [vmem:[%s7 + $0x8] sm:$0xf]
    %v363 = vld [vmem:[%s7 + $0xc] sm:$0xf]
    %v364 = vld [vmem:[%s7 + $0x10] sm:$0xf]
    %v365 = vld [vmem:[%s7 + $0x14] sm:$0xf]
    %v366 = vld [vmem:[%s7 + $0x18] sm:$0xf]
    %v367 = vld [vmem:[%s7 + $0x1c] sm:$0xf]
    %v368 = vld [vmem:[%s7 + $0x20] sm:$0xf]
    %v369 = vld [vmem:[%s7 + $0x24] sm:$0xf]
    %v370 = vld [vmem:[%s7 + $0x28] sm:$0xf]
    %v371 = vld [vmem:[%s7 + $0x2c] sm:$0xf]
    %v372 = vld [vmem:[%s7 + $0x30] sm:$0xf]
    %v373 = vld [vmem:[%s7 + $0x34] sm:$0xf]
    %v374 = vld [vmem:[%s7 + $0x38] sm:$0xf]
    %v375 = vld [vmem:[%s7 + $0x3c] sm:$0xf]
    %v376 = vld [vmem:[%s8] sm:$0x1]
    %v378 = vlaneseq
    %v379 = vshrl.u32 %v378, 7
    %v380 = vsub.s32 0, %v379
    %v381 = vrot.slane %v376, %v380
    %v399 = vunpack.c.l.b16 %v360
    %v400 = vunpack.c.l.b16 %v361
    %v401 = vunpack.c.l.b16 %v362
    %v402 = vunpack.c.l.b16 %v363
    %v403 = vunpack.c.l.b16 %v364
    %v404 = vunpack.c.l.b16 %v365
    %v405 = vunpack.c.l.b16 %v366
    %v406 = vunpack.c.l.b16 %v367
    %v407 = vunpack.c.l.b16 %v368
    %v408 = vunpack.c.l.b16 %v369
    %v409 = vunpack.c.l.b16 %v370
    %v410 = vunpack.c.l.b16 %v371
    %v411 = vunpack.c.l.b16 %v372
    %v412 = vunpack.c.l.b16 %v373
    %v413 = vunpack.c.l.b16 %v374
    %v414 = vunpack.c.l.b16 %v375
    %v415 = vpack.c.b16 %v400, %v399
    %v416 = vpack.c.b16 %v402, %v401
    %v417 = vpack.c.b16 %v404, %v403
    %v418 = vpack.c.b16 %v406, %v405
    %v419 = vpack.c.b16 %v408, %v407
    %v420 = vpack.c.b16 %v410, %v409
    %v421 = vpack.c.b16 %v412, %v411
    %v422 = vpack.c.b16 %v414, %v413
    %431 = vmatprep.subr.bf16.mxu0 0
    %432 = vmatpush1.bf16.msra.mxu0 %v415
    %433 = vmatprep.subr.bf16.mxu0 0
    %434 = vmatpush1.bf16.msra.mxu0 %v416
    %435 = vmatprep.subr.bf16.mxu0 0
    %436 = vmatpush1.bf16.msra.mxu0 %v417
    %437 = vmatprep.subr.bf16.mxu0 0
    %438 = vmatpush1.bf16.msra.mxu0 %v418
    %439 = vmatprep.subr.bf16.mxu0 0
    %440 = vmatpush1.bf16.msra.mxu0 %v419
    %441 = vmatprep.subr.bf16.mxu0 0
    %442 = vmatpush1.bf16.msra.mxu0 %v420
    %443 = vmatprep.subr.bf16.mxu0 0
    %444 = vmatpush1.bf16.msra.mxu0 %v421
    %445 = vmatprep.subr.bf16.mxu0 0
    %446 = vmatpush1.bf16.msra.mxu0 %v422
    %447 = vmatprep.subr.bf16.mxu0 0
    %448 = vmatpush1.bf16.msra.mxu0 0
    %449 = vmatprep.subr.bf16.mxu0 0
    %450 = vmatpush1.bf16.msra.mxu0 0
    %451 = vmatprep.subr.bf16.mxu0 0
    %452 = vmatpush1.bf16.msra.mxu0 0
    %453 = vmatprep.subr.bf16.mxu0 0
    %454 = vmatpush1.bf16.msra.mxu0 0
    %455 = vmatprep.subr.bf16.mxu0 0
    %456 = vmatpush1.bf16.msra.mxu0 0
    %457 = vmatprep.subr.bf16.mxu0 0
    %458 = vmatpush1.bf16.msra.mxu0 0
    %459 = vmatprep.subr.bf16.mxu0 0
    %460 = vmatpush1.bf16.msra.mxu0 0
    %461 = vmatprep.subr.bf16.mxu0 0
    %462 = vmatpush1.bf16.msra.mxu0 0
    %463 = vmatprep.mubr.bf16.mxu0 0
    %464 = vmatmul.mubr.bf16.gmra.mrb[0].mxu0 %v359
    %v465 = vpop.f32.mrb[0].mxu0
    %v466 = vadd.f32 %v381, %v465
    %v467 = vpop.f32.mrb[0].mxu0
    %v468 = vpop.f32.mrb[0].mxu0
    %v469 = vpop.f32.mrb[0].mxu0
    %470 = vdwg.mxu0
    %vm471 = vcmask 130048
    %472 = vst.msk [vmem:[#allocation7] sm:$0xff] %vm471, %v466
    // Predicated region
    $region46: #{tpu_custom_call.1} parent=1 // pred_check
      _
    $region47: #{tpu_custom_call.1} parent=1 // pred_check_branch
      %474 = sbr.rel (0) target = $region49
    $region48: #{tpu_custom_call.1} parent=1 // pred_region
      %s476 = ssub.s32 128, 128
      %477 = vsyncadd [#allocation4], %s476
      %s479 = sshll.u32 [#allocation7], 4
      %s480 = int_to_ptr.vmem [resolvable:$true] %s479
      %482 = dma.vmem_to_hbm [thread:$0]  %s480, 128, %s9, [#allocation4]
    $region49: #{tpu_custom_call.1} parent=1 // pred_fallthru
      _
    // Predicated region
    $region50: #{tpu_custom_call.1} parent=1 // pred_check
      _
    $region51: #{tpu_custom_call.1} parent=1 // pred_check_branch
      %484 = sbr.rel (0) target = $region53
    $region52: #{tpu_custom_call.1} parent=1 // pred_region
      %485 = dma.done [#allocation4], 128
    $region53: #{tpu_custom_call.1} parent=1 // pred_fallthru
      _
    %486 = vsyncpa [#allocation3], 1
    %487 = vsyncpa [#allocation6], 1
    %488 = vsyncpa [#allocation4], 1

</llo_original>
